<compile_context>
chip_gen: v5e
topology: v5e:2x2
jax: 0.10.0
libtpu: 0.0.40
codegen_flags: <defaults>
</compile_context>

<pallas_src>
import functools

import jax
import jax.numpy as jnp
from jax.experimental import pallas as pl
from jax.experimental.pallas import tpu as pltpu


def _round_up(n, m):
    return ((n + m - 1) // m) * m


def _cdiv(a, b):
    return (a + b - 1) // b


def _choose_block_batch(batch, max_tb=512, min_grid=4):
    """Pick the batch tile: big tiles for bandwidth, but >= `min_grid` grid
    steps when the batch allows (>= 2 steps per TensorCore on dual-TC v7x),
    never below 128 rows (full MXU passes on v5e), always a multiple of 8."""
    br = _round_up(batch, 8)
    if br <= 128:
        return br
    tb = min(max_tb, max(128, (br // 128) * 128))
    while tb > 128 and _cdiv(br, tb) < min_grid:
        tb -= 128
    return tb


def adversary_kernel(x_ref, w1_ref, b1_ref, w2_ref, b2_ref, w3_ref, b3_ref,
                     out_ref):
    # fc1 + ReLU  (bf16 operands -> f32 accumulate; epilogue stays f32)
    x = x_ref[...].astype(w1_ref.dtype)
    h1 = jnp.dot(x, w1_ref[...], preferred_element_type=jnp.float32)
    h1 = jnp.maximum(h1 + b1_ref[...], 0.0)

    # fc2 + ReLU
    h2 = jnp.dot(h1.astype(w2_ref.dtype), w2_ref[...],
                 preferred_element_type=jnp.float32)
    h2 = jnp.maximum(h2 + b2_ref[...], 0.0)

    # fc3 (no activation)
    y = jnp.dot(h2.astype(w3_ref.dtype), w3_ref[...],
                preferred_element_type=jnp.float32)
    out_ref[...] = (y + b3_ref[...]).astype(out_ref.dtype)


def prepare_params(w1, b1, w2, b2, w3, b3, *, compute_dtype=jnp.bfloat16):
    """One-time parameter prep (hoisted out of the per-call path).

    Pads hidden / class dims to 128-lane multiples, casts weights to the MXU
    compute dtype, keeps biases in f32 shaped [1, out] (added post-matmul).
    The input dim D is left UNPADDED.  Weights must be [in, out]."""
    D, H = w1.shape
    C = w3.shape[1]
    Hp, Cp = _round_up(H, 128), _round_up(C, 128)

    pad2 = lambda a, r, c: jnp.pad(a, ((0, r - a.shape[0]), (0, c - a.shape[1])))
    pad1 = lambda a, c: jnp.pad(a, (0, c - a.shape[0]))

    return (
        pad2(w1, D, Hp).astype(compute_dtype),
        pad1(b1, Hp).astype(jnp.float32).reshape(1, Hp),
        pad2(w2, Hp, Hp).astype(compute_dtype),
        pad1(b2, Hp).astype(jnp.float32).reshape(1, Hp),
        pad2(w3, Hp, Cp).astype(compute_dtype),
        pad1(b3, Cp).astype(jnp.float32).reshape(1, Cp),
    )


@functools.partial(jax.jit,
                   static_argnames=("num_classes", "block_batch", "out_dtype"))
def adversary_forward(x, params, *, num_classes, block_batch=None,
                      out_dtype=jnp.float32):
    """x: [B, input_size] (f32); params: output of prepare_params."""
    w1, b1, w2, b2, w3, b3 = params
    B, D = x.shape
    Hp = w1.shape[1]
    Cp = w3.shape[1]

    # --- batch tiling (only x / out stream; weights stay resident) ---
    if block_batch is None:
        TB = _choose_block_batch(B)
    else:
        TB = min(block_batch, _round_up(B, 8))
    Bp = _round_up(B, TB)
    x_p = x if Bp == B else jnp.pad(x, ((0, Bp - B), (0, 0)))

    grid = (Bp // TB,)

    # Constant block index -> weights/biases resident in VMEM across grid steps.
    resident = lambda r, c: pl.BlockSpec((r, c), lambda i: (0, 0))

    # Honest (unpadded-D) scheduling hint for XLA.
    flops = 2 * Bp * (D * Hp + Hp * Hp + Hp * Cp)
    bytes_accessed = (x_p.size * x_p.dtype.itemsize
                      + sum(a.size * a.dtype.itemsize
                            for a in (w1, b1, w2, b2, w3, b3))
                      + Bp * Cp * jnp.dtype(out_dtype).itemsize)

    out_p = pl.pallas_call(
        adversary_kernel,
        out_shape=jax.ShapeDtypeStruct((Bp, Cp), out_dtype),
        grid=grid,
        in_specs=[
            pl.BlockSpec((TB, D), lambda i: (i, 0)),   # x tile (streamed, D unpadded)
            resident(D, Hp), resident(1, Hp),          # w1, b1
            resident(Hp, Hp), resident(1, Hp),         # w2, b2
            resident(Hp, Cp), resident(1, Cp),         # w3, b3
        ],
        out_specs=pl.BlockSpec((TB, Cp), lambda i: (i, 0)),
        compiler_params=pltpu.CompilerParams(
            dimension_semantics=("parallel",)),        # megacore sharding on v7x
        cost_estimate=pl.CostEstimate(flops=flops, transcendentals=0,
                                      bytes_accessed=bytes_accessed),
    )(x_p, w1, b1, w2, b2, w3, b3)

    return out_p[:B, :num_classes]


def init_params(key, input_size, hidden_size, num_classes):
    """torch.nn.Linear-style U(-1/sqrt(fan_in), 1/sqrt(fan_in)) init.
    Returned weights are [in_features, out_features] (transposed vs PyTorch)."""
    ks = jax.random.split(key, 6)

    def linear(kw, kb, fan_in, fan_out):
        bound = 1.0 / jnp.sqrt(fan_in)
        w = jax.random.uniform(kw, (fan_in, fan_out), jnp.float32, -bound, bound)
        b = jax.random.uniform(kb, (fan_out,), jnp.float32, -bound, bound)
        return w, b

    w1, b1 = linear(ks[0], ks[1], input_size, hidden_size)
    w2, b2 = linear(ks[2], ks[3], hidden_size, hidden_size)
    w3, b3 = linear(ks[4], ks[5], hidden_size, num_classes)
    return w1, b1, w2, b2, w3, b3


def _reference(x, w1, b1, w2, b2, w3, b3, compute_dtype):
    """Pure-JAX reference with the same dtype policy as the kernel."""
    cd = compute_dtype
    h1 = jnp.maximum(
        jnp.dot(x.astype(cd), w1.astype(cd),
                preferred_element_type=jnp.float32) + b1, 0.0)
    h2 = jnp.maximum(
        jnp.dot(h1.astype(cd), w2.astype(cd),
                preferred_element_type=jnp.float32) + b2, 0.0)
    return jnp.dot(h2.astype(cd), w3.astype(cd),
                   preferred_element_type=jnp.float32) + b3


if __name__ == "__main__":
    input_size, hidden_size, num_classes = 32, 64, 16
    batch = 512   # -> TB=128, grid=4: two pipelined steps per v7x TensorCore

    key = jax.random.PRNGKey(0)
    k_params, k_x = jax.random.split(key)

    w1, b1, w2, b2, w3, b3 = init_params(k_params, input_size, hidden_size,
                                         num_classes)
    x = jax.random.normal(k_x, (batch, input_size), jnp.float32)

    # One-time parameter prep (pad + bf16 cast), hoisted out of the forward.
    params = jax.block_until_ready(prepare_params(w1, b1, w2, b2, w3, b3))

    out = adversary_forward(x, params, num_classes=num_classes)
    out = jax.block_until_ready(out)
    assert out.shape == (batch, num_classes)

    # Same-dtype-policy reference (bf16 operands, f32 accumulate): tight check.
    ref_bf16 = _reference(x, w1, b1, w2, b2, w3, b3, jnp.bfloat16)
    assert jnp.allclose(out, ref_bf16, atol=1e-3, rtol=1e-3), \
        "mismatch vs bf16-policy reference"

    # Full-f32 reference: loose check that semantics match the PyTorch module.
    ref_f32 = _reference(x, w1, b1, w2, b2, w3, b3, jnp.float32)
    assert jnp.allclose(out, ref_f32, atol=5e-2, rtol=5e-2), \
        "mismatch vs f32 reference"

    print("KERNEL_OK")
</pallas_src>

<mosaic_0001>
module attributes {stable_mosaic.version = 11 : i64} {
  func.func @adversary_kernel(%arg0: i32, %arg1: memref<128x32xf32, #tpu.memory_space<vmem>>, %arg2: memref<32x128xbf16, #tpu.memory_space<vmem>>, %arg3: memref<1x128xf32, #tpu.memory_space<vmem>>, %arg4: memref<128x128xbf16, #tpu.memory_space<vmem>>, %arg5: memref<1x128xf32, #tpu.memory_space<vmem>>, %arg6: memref<128x128xbf16, #tpu.memory_space<vmem>>, %arg7: memref<1x128xf32, #tpu.memory_space<vmem>>, %arg8: memref<128x128xf32, #tpu.memory_space<vmem>>) attributes {dimension_semantics = [#tpu.dimension_semantics<parallel>], iteration_bounds = array<i64: 4>, scalar_prefetch = 0 : i64, scratch_operands = 0 : i64, tpu.core_type = #tpu.core_type<tc>, window_params = [{transform_indices = @transform_0, window_bounds = array<i64: 128, 32>}, {pipeline_mode = #tpu.pipeline_mode<synchronous>, transform_indices = @transform_1, window_bounds = array<i64: 32, 128>}, {pipeline_mode = #tpu.pipeline_mode<synchronous>, transform_indices = @transform_2, window_bounds = array<i64: 1, 128>}, {pipeline_mode = #tpu.pipeline_mode<synchronous>, transform_indices = @transform_3, window_bounds = array<i64: 128, 128>}, {pipeline_mode = #tpu.pipeline_mode<synchronous>, transform_indices = @transform_4, window_bounds = array<i64: 1, 128>}, {pipeline_mode = #tpu.pipeline_mode<synchronous>, transform_indices = @transform_5, window_bounds = array<i64: 128, 128>}, {pipeline_mode = #tpu.pipeline_mode<synchronous>, transform_indices = @transform_6, window_bounds = array<i64: 1, 128>}, {transform_indices = @transform_7, window_bounds = array<i64: 128, 128>}]} {
    %c0 = arith.constant 0 : index
    %c0_0 = arith.constant 0 : index
    %0 = vector.load %arg1[%c0, %c0_0] : memref<128x32xf32, #tpu.memory_space<vmem>>, vector<128x32xf32>
    %1 = arith.truncf %0 : vector<128x32xf32> to vector<128x32xbf16>
    %c0_1 = arith.constant 0 : index
    %c0_2 = arith.constant 0 : index
    %2 = vector.load %arg2[%c0_1, %c0_2] : memref<32x128xbf16, #tpu.memory_space<vmem>>, vector<32x128xbf16>
    %cst = arith.constant dense<0.000000e+00> : vector<128x128xf32>
    %3 = tpu.matmul %1, %2, %cst {dimension_numbers = #tpu.dot_dimension_numbers<[1], [0], [0], [1], [0, 0, 1, 1], [], []>} : vector<128x32xbf16>, vector<32x128xbf16>, vector<128x128xf32> -> vector<128x128xf32>
    %c0_3 = arith.constant 0 : index
    %c0_4 = arith.constant 0 : index
    %4 = vector.load %arg3[%c0_3, %c0_4] : memref<1x128xf32, #tpu.memory_space<vmem>>, vector<1x128xf32>
    %5 = vector.broadcast %4 : vector<1x128xf32> to vector<128x128xf32>
    %6 = arith.addf %3, %5 : vector<128x128xf32>
    %cst_5 = arith.constant 0.000000e+00 : f32
    %7 = vector.broadcast %cst_5 : f32 to vector<128x128xf32>
    %8 = arith.maximumf %6, %7 : vector<128x128xf32>
    %9 = arith.truncf %8 : vector<128x128xf32> to vector<128x128xbf16>
    %c0_6 = arith.constant 0 : index
    %c0_7 = arith.constant 0 : index
    %10 = vector.load %arg4[%c0_6, %c0_7] : memref<128x128xbf16, #tpu.memory_space<vmem>>, vector<128x128xbf16>
    %cst_8 = arith.constant dense<0.000000e+00> : vector<128x128xf32>
    %11 = tpu.matmul %9, %10, %cst_8 {dimension_numbers = #tpu.dot_dimension_numbers<[1], [0], [0], [1], [0, 0, 1, 1], [], []>} : vector<128x128xbf16>, vector<128x128xbf16>, vector<128x128xf32> -> vector<128x128xf32>
    %c0_9 = arith.constant 0 : index
    %c0_10 = arith.constant 0 : index
    %12 = vector.load %arg5[%c0_9, %c0_10] : memref<1x128xf32, #tpu.memory_space<vmem>>, vector<1x128xf32>
    %13 = vector.broadcast %12 : vector<1x128xf32> to vector<128x128xf32>
    %14 = arith.addf %11, %13 : vector<128x128xf32>
    %cst_11 = arith.constant 0.000000e+00 : f32
    %15 = vector.broadcast %cst_11 : f32 to vector<128x128xf32>
    %16 = arith.maximumf %14, %15 : vector<128x128xf32>
    %17 = arith.truncf %16 : vector<128x128xf32> to vector<128x128xbf16>
    %c0_12 = arith.constant 0 : index
    %c0_13 = arith.constant 0 : index
    %18 = vector.load %arg6[%c0_12, %c0_13] : memref<128x128xbf16, #tpu.memory_space<vmem>>, vector<128x128xbf16>
    %cst_14 = arith.constant dense<0.000000e+00> : vector<128x128xf32>
    %19 = tpu.matmul %17, %18, %cst_14 {dimension_numbers = #tpu.dot_dimension_numbers<[1], [0], [0], [1], [0, 0, 1, 1], [], []>} : vector<128x128xbf16>, vector<128x128xbf16>, vector<128x128xf32> -> vector<128x128xf32>
    %c0_15 = arith.constant 0 : index
    %c0_16 = arith.constant 0 : index
    %20 = vector.load %arg7[%c0_15, %c0_16] : memref<1x128xf32, #tpu.memory_space<vmem>>, vector<1x128xf32>
    %21 = vector.broadcast %20 : vector<1x128xf32> to vector<128x128xf32>
    %22 = arith.addf %19, %21 : vector<128x128xf32>
    %c0_17 = arith.constant 0 : index
    %c0_18 = arith.constant 0 : index
    %23 = vector.load %arg8[%c0_17, %c0_18] : memref<128x128xf32, #tpu.memory_space<vmem>>, vector<128x128xf32>
    tpu.vector_store %arg8[%c0_17, %c0_18], %22 {strides = array<i32>} : memref<128x128xf32, #tpu.memory_space<vmem>>, vector<128x128xf32>,
    return
  }
  func.func @transform_0(%arg0: i32) -> (i32, i32) {
    %c0_i32 = arith.constant 0 : i32
    %c0_i32_0 = arith.constant 0 : i32
    return %arg0, %c0_i32 : i32, i32
  }
  func.func @transform_1(%arg0: i32) -> (i32, i32) {
    %c0_i32 = arith.constant 0 : i32
    %c0_i32_0 = arith.constant 0 : i32
    %c0_i32_1 = arith.constant 0 : i32
    return %c0_i32, %c0_i32_0 : i32, i32
  }
  func.func @transform_2(%arg0: i32) -> (i32, i32) {
    %c0_i32 = arith.constant 0 : i32
    %c0_i32_0 = arith.constant 0 : i32
    %c0_i32_1 = arith.constant 0 : i32
    return %c0_i32, %c0_i32_0 : i32, i32
  }
  func.func @transform_3(%arg0: i32) -> (i32, i32) {
    %c0_i32 = arith.constant 0 : i32
    %c0_i32_0 = arith.constant 0 : i32
    %c0_i32_1 = arith.constant 0 : i32
    return %c0_i32, %c0_i32_0 : i32, i32
  }
  func.func @transform_4(%arg0: i32) -> (i32, i32) {
    %c0_i32 = arith.constant 0 : i32
    %c0_i32_0 = arith.constant 0 : i32
    %c0_i32_1 = arith.constant 0 : i32
    return %c0_i32, %c0_i32_0 : i32, i32
  }
  func.func @transform_5(%arg0: i32) -> (i32, i32) {
    %c0_i32 = arith.constant 0 : i32
    %c0_i32_0 = arith.constant 0 : i32
    %c0_i32_1 = arith.constant 0 : i32
    return %c0_i32, %c0_i32_0 : i32, i32
  }
  func.func @transform_6(%arg0: i32) -> (i32, i32) {
    %c0_i32 = arith.constant 0 : i32
    %c0_i32_0 = arith.constant 0 : i32
    %c0_i32_1 = arith.constant 0 : i32
    return %c0_i32, %c0_i32_0 : i32, i32
  }
  func.func @transform_7(%arg0: i32) -> (i32, i32) {
    %c0_i32 = arith.constant 0 : i32
    %c0_i32_0 = arith.constant 0 : i32
    return %arg0, %c0_i32 : i32, i32
  }
}

</mosaic_0001>

<llo_original>
// kernel: adversary_forward.1
$region0: #{adversary_forward.1}
  #allocation0 [shape = 'u32[]', space=smem, size = 0x4, offset = 0x4, fixed_abs, tag = 'smem constant byte address 0x4 - core index']
  #allocation1 [shape = 'u32[72,128]{1,0:T(1,128)}', space=vmem, size = 0x9000, scoped, tag = 'internal scratch']
  %s0 = inlined_call_operand.vmem [shape: f32[512,32], index: 0, kind: input, shape index: {}]
  %s1 = inlined_call_operand.vmem [shape: bf16[32,128], index: 1, kind: input, shape index: {}]
  %s2 = inlined_call_operand.vmem [shape: f32[1,128], index: 2, kind: input, shape index: {}]
  %s3 = inlined_call_operand.vmem [shape: bf16[128,128], index: 3, kind: input, shape index: {}]
  %s4 = inlined_call_operand.vmem [shape: f32[1,128], index: 4, kind: input, shape index: {}]
  %s5 = inlined_call_operand.vmem [shape: bf16[128,128], index: 5, kind: input, shape index: {}]
  %s6 = inlined_call_operand.vmem [shape: f32[1,128], index: 6, kind: input, shape index: {}]
  %s7 = inlined_call_operand.vmem [shape: f32[512,128], index: 7, kind: output, shape index: {}]
  %s8 = sld [smem:[#allocation0]]
  $region61: #{adversary_forward.1} parent=0
    _
  %s10 = ssub.s32 1, %s8
  %s11 = scalar_select 0, %s10, %s8
  loop: start=0, step=1, limit=6
  $region2: #{adversary_forward.1} parent=0 // loop_pre_header
    _
  $region3: #{adversary_forward.1} parent=0 // loop_header
    %s13 = sphi 0, %s17
    %p14 = scmp.ge.s32.totalorder %s13, 6
    %s23 = sphi 0, %s25
    %s26 = sphi 0, %s23
    %s27 = sphi 0, %s26
    %s43 = sphi 0, %s27
    %s47 = sphi 0, %s47
    %s49 = sphi 0, %s47
    %s50 = sphi 0, %s49
    %s64 = sphi 0, %s50
    %s68 = sphi 0, %s68
    %s70 = sphi 0, %s68
    %s71 = sphi 0, %s70
    %s85 = sphi 0, %s71
    %s89 = sphi 0, %s89
    %s91 = sphi 0, %s89
    %s92 = sphi 0, %s91
    %s106 = sphi 0, %s92
    %s110 = sphi 0, %s110
    %s112 = sphi 0, %s110
    %s113 = sphi 0, %s112
    %s127 = sphi 0, %s113
    %s131 = sphi 0, %s131
    %s133 = sphi 0, %s131
    %s134 = sphi 0, %s133
    %s148 = sphi 0, %s134
    %s152 = sphi 0, %s152
    %s154 = sphi 0, %s152
    %s155 = sphi 0, %s154
    %s169 = sphi 0, %s155
    %s175 = sphi 0, %s177
    %s178 = sphi 0, %s175
    %s179 = sphi 0, %s178
    %s195 = sphi 0, %s179
  $region4: #{adversary_forward.1} parent=0 // loop_header_branch
    %16 = sbr.rel (%p14) target = $region8
  $region5: #{adversary_forward.1} parent=0 // loop_body
    %s18 = ssub.s32 %s13, 1
    %s19 = ssub.s32 %s13, 2
    %s20 = sadd.s32 %s13, 1
    %s21 = ssub.s32 %s13, %s20
    %p22 = scmp.eq.s32.totalorder %s21, 0
    %s24 = sadd.s32 %s23, 1
    %s25 = scalar_select %p22, %s23, %s24
    %p28 = pneg %p22
    %p29 = scmp.eq.s32.totalorder %s13, 3
    %p30 = por %p28, %p29
    %p31 = scmp.ne.s32.totalorder %s23, %s26
    %p32 = scmp.eq.s32.totalorder %s13, 0
    %p33 = por %p31, %p32
    %p34 = scmp.ne.s32.totalorder %s23, %s26
    %p35 = scmp.eq.s32.totalorder %s18, 3
    %p36 = por %p34, %p35
    %p37 = scmp.ne.s32.totalorder %s26, %s27
    %p38 = scmp.eq.s32.totalorder %s18, 0
    %p39 = por %p37, %p38
    %p40 = scmp.ne.s32.totalorder %s26, %s27
    %p41 = scmp.eq.s32.totalorder %s19, 3
    %p42 = por %p40, %p41
    %p44 = scmp.ne.s32.totalorder %s27, %s43
    %p45 = scmp.eq.s32.totalorder %s19, 0
    %p46 = por %p44, %p45
    %s48 = sadd.s32 %s47, 1
    %p51 = scmp.eq.s32.totalorder %s13, 3
    %p52 = scmp.ne.s32.totalorder %s47, %s49
    %p53 = scmp.eq.s32.totalorder %s13, 0
    %p54 = por %p52, %p53
    %p55 = scmp.ne.s32.totalorder %s47, %s49
    %p56 = scmp.eq.s32.totalorder %s18, 3
    %p57 = por %p55, %p56
    %p58 = scmp.ne.s32.totalorder %s49, %s50
    %p59 = scmp.eq.s32.totalorder %s18, 0
    %p60 = por %p58, %p59
    %p61 = scmp.ne.s32.totalorder %s49, %s50
    %p62 = scmp.eq.s32.totalorder %s19, 3
    %p63 = por %p61, %p62
    %p65 = scmp.ne.s32.totalorder %s50, %s64
    %p66 = scmp.eq.s32.totalorder %s19, 0
    %p67 = por %p65, %p66
    %s69 = sadd.s32 %s68, 1
    %p72 = scmp.eq.s32.totalorder %s13, 3
    %p73 = scmp.ne.s32.totalorder %s68, %s70
    %p74 = scmp.eq.s32.totalorder %s13, 0
    %p75 = por %p73, %p74
    %p76 = scmp.ne.s32.totalorder %s68, %s70
    %p77 = scmp.eq.s32.totalorder %s18, 3
    %p78 = por %p76, %p77
    %p79 = scmp.ne.s32.totalorder %s70, %s71
    %p80 = scmp.eq.s32.totalorder %s18, 0
    %p81 = por %p79, %p80
    %p82 = scmp.ne.s32.totalorder %s70, %s71
    %p83 = scmp.eq.s32.totalorder %s19, 3
    %p84 = por %p82, %p83
    %p86 = scmp.ne.s32.totalorder %s71, %s85
    %p87 = scmp.eq.s32.totalorder %s19, 0
    %p88 = por %p86, %p87
    %s90 = sadd.s32 %s89, 1
    %p93 = scmp.eq.s32.totalorder %s13, 3
    %p94 = scmp.ne.s32.totalorder %s89, %s91
    %p95 = scmp.eq.s32.totalorder %s13, 0
    %p96 = por %p94, %p95
    %p97 = scmp.ne.s32.totalorder %s89, %s91
    %p98 = scmp.eq.s32.totalorder %s18, 3
    %p99 = por %p97, %p98
    %p100 = scmp.ne.s32.totalorder %s91, %s92
    %p101 = scmp.eq.s32.totalorder %s18, 0
    %p102 = por %p100, %p101
    %p103 = scmp.ne.s32.totalorder %s91, %s92
    %p104 = scmp.eq.s32.totalorder %s19, 3
    %p105 = por %p103, %p104
    %p107 = scmp.ne.s32.totalorder %s92, %s106
    %p108 = scmp.eq.s32.totalorder %s19, 0
    %p109 = por %p107, %p108
    %s111 = sadd.s32 %s110, 1
    %p114 = scmp.eq.s32.totalorder %s13, 3
    %p115 = scmp.ne.s32.totalorder %s110, %s112
    %p116 = scmp.eq.s32.totalorder %s13, 0
    %p117 = por %p115, %p116
    %p118 = scmp.ne.s32.totalorder %s110, %s112
    %p119 = scmp.eq.s32.totalorder %s18, 3
    %p120 = por %p118, %p119
    %p121 = scmp.ne.s32.totalorder %s112, %s113
    %p122 = scmp.eq.s32.totalorder %s18, 0
    %p123 = por %p121, %p122
    %p124 = scmp.ne.s32.totalorder %s112, %s113
    %p125 = scmp.eq.s32.totalorder %s19, 3
    %p126 = por %p124, %p125
    %p128 = scmp.ne.s32.totalorder %s113, %s127
    %p129 = scmp.eq.s32.totalorder %s19, 0
    %p130 = por %p128, %p129
    %s132 = sadd.s32 %s131, 1
    %p135 = scmp.eq.s32.totalorder %s13, 3
    %p136 = scmp.ne.s32.totalorder %s131, %s133
    %p137 = scmp.eq.s32.totalorder %s13, 0
    %p138 = por %p136, %p137
    %p139 = scmp.ne.s32.totalorder %s131, %s133
    %p140 = scmp.eq.s32.totalorder %s18, 3
    %p141 = por %p139, %p140
    %p142 = scmp.ne.s32.totalorder %s133, %s134
    %p143 = scmp.eq.s32.totalorder %s18, 0
    %p144 = por %p142, %p143
    %p145 = scmp.ne.s32.totalorder %s133, %s134
    %p146 = scmp.eq.s32.totalorder %s19, 3
    %p147 = por %p145, %p146
    %p149 = scmp.ne.s32.totalorder %s134, %s148
    %p150 = scmp.eq.s32.totalorder %s19, 0
    %p151 = por %p149, %p150
    %s153 = sadd.s32 %s152, 1
    %p156 = scmp.eq.s32.totalorder %s13, 3
    %p157 = scmp.ne.s32.totalorder %s152, %s154
    %p158 = scmp.eq.s32.totalorder %s13, 0
    %p159 = por %p157, %p158
    %p160 = scmp.ne.s32.totalorder %s152, %s154
    %p161 = scmp.eq.s32.totalorder %s18, 3
    %p162 = por %p160, %p161
    %p163 = scmp.ne.s32.totalorder %s154, %s155
    %p164 = scmp.eq.s32.totalorder %s18, 0
    %p165 = por %p163, %p164
    %p166 = scmp.ne.s32.totalorder %s154, %s155
    %p167 = scmp.eq.s32.totalorder %s19, 3
    %p168 = por %p166, %p167
    %p170 = scmp.ne.s32.totalorder %s155, %s169
    %p171 = scmp.eq.s32.totalorder %s19, 0
    %p172 = por %p170, %p171
    %s173 = ssub.s32 %s13, %s20
    %p174 = scmp.eq.s32.totalorder %s173, 0
    %s176 = sadd.s32 %s175, 1
    %s177 = scalar_select %p174, %s175, %s176
    %p180 = pneg %p174
    %p181 = scmp.eq.s32.totalorder %s13, 3
    %p182 = por %p180, %p181
    %p183 = scmp.ne.s32.totalorder %s175, %s178
    %p184 = scmp.eq.s32.totalorder %s13, 0
    %p185 = por %p183, %p184
    %p186 = scmp.ne.s32.totalorder %s175, %s178
    %p187 = scmp.eq.s32.totalorder %s18, 3
    %p188 = por %p186, %p187
    %p189 = scmp.ne.s32.totalorder %s178, %s179
    %p190 = scmp.eq.s32.totalorder %s18, 0
    %p191 = por %p189, %p190
    %p192 = scmp.ne.s32.totalorder %s178, %s179
    %p193 = scmp.eq.s32.totalorder %s19, 3
    %p194 = por %p192, %p193
    %p196 = scmp.ne.s32.totalorder %s179, %s195
    %p197 = scmp.eq.s32.totalorder %s19, 0
    %p198 = por %p196, %p197
    %p199 = scmp.le.s32.totalorder 1, %s13
    %p200 = scmp.lt.s32.totalorder %s13, 5
    %p201 = pnand %p199, %p200
    %p202 = pneg %p201
    // Predicated region
    $region9: #{adversary_forward.1} parent=5 // pred_check
      _
    $region10: #{adversary_forward.1} parent=5 // pred_check_branch
      %204 = sbr.rel (%p201) target = $region12
    $region11: #{adversary_forward.1} parent=5 // pred_region
      %s205 = ssub.s32 %s13, 1
      // Predicated region
      $region13: #{adversary_forward.1} parent=11 // pred_check
        %p206 = pneg %p60
      $region14: #{adversary_forward.1} parent=11 // pred_check_branch
        %208 = sbr.rel (%p206) target = $region16
      $region15: #{adversary_forward.1} parent=11 // pred_region
        _
      $region16: #{adversary_forward.1} parent=11 // pred_fallthru
        _
      // Predicated region
      $region17: #{adversary_forward.1} parent=11 // pred_check
        %p209 = pneg %p81
      $region18: #{adversary_forward.1} parent=11 // pred_check_branch
        %211 = sbr.rel (%p209) target = $region20
      $region19: #{adversary_forward.1} parent=11 // pred_region
        _
      $region20: #{adversary_forward.1} parent=11 // pred_fallthru
        _
      // Predicated region
      $region21: #{adversary_forward.1} parent=11 // pred_check
        %p212 = pneg %p102
      $region22: #{adversary_forward.1} parent=11 // pred_check_branch
        %214 = sbr.rel (%p212) target = $region24
      $region23: #{adversary_forward.1} parent=11 // pred_region
        _
      $region24: #{adversary_forward.1} parent=11 // pred_fallthru
        _
      // Predicated region
      $region25: #{adversary_forward.1} parent=11 // pred_check
        %p215 = pneg %p123
      $region26: #{adversary_forward.1} parent=11 // pred_check_branch
        %217 = sbr.rel (%p215) target = $region28
      $region27: #{adversary_forward.1} parent=11 // pred_region
        _
      $region28: #{adversary_forward.1} parent=11 // pred_fallthru
        _
      // Predicated region
      $region29: #{adversary_forward.1} parent=11 // pred_check
        %p218 = pneg %p144
      $region30: #{adversary_forward.1} parent=11 // pred_check_branch
        %220 = sbr.rel (%p218) target = $region32
      $region31: #{adversary_forward.1} parent=11 // pred_region
        _
      $region32: #{adversary_forward.1} parent=11 // pred_fallthru
        _
      // Predicated region
      $region33: #{adversary_forward.1} parent=11 // pred_check
        %p221 = pneg %p165
      $region34: #{adversary_forward.1} parent=11 // pred_check_branch
        %223 = sbr.rel (%p221) target = $region36
      $region35: #{adversary_forward.1} parent=11 // pred_region
        _
      $region36: #{adversary_forward.1} parent=11 // pred_fallthru
        _
    $region12: #{adversary_forward.1} parent=5 // pred_fallthru
      _
    %p224 = scmp.lt.s32.totalorder %s13, 4
    // Predicated region
    $region37: #{adversary_forward.1} parent=5 // pred_check
      %p225 = pneg %p224
    $region38: #{adversary_forward.1} parent=5 // pred_check_branch
      %227 = sbr.rel (%p225) target = $region40
    $region39: #{adversary_forward.1} parent=5 // pred_region
      // Predicated region
      $region41: #{adversary_forward.1} parent=39 // pred_check
        %p228 = pneg %p33
      $region42: #{adversary_forward.1} parent=39 // pred_check_branch
        %230 = sbr.rel (%p228) target = $region44
      $region43: #{adversary_forward.1} parent=39 // pred_region
        %s231 = smul.u32 16, %s13
        %p232 = scmp.lt.s32.totalorder %s231, 63
        %s233 = scalar_select %p232, %s231, 63
        %s234 = smul.addr %s233, 8
        %s235 = scalar_lea.vmem %s0, %s234
        %s236 = smul.u32 16, %s13
      $region44: #{adversary_forward.1} parent=39 // pred_fallthru
        _
    $region40: #{adversary_forward.1} parent=5 // pred_fallthru
      _
    %p237 = scmp.le.s32.totalorder 1, %s13
    %p238 = scmp.lt.s32.totalorder %s13, 5
    %p239 = pnand %p237, %p238
    %p240 = pneg %p239
    // Predicated region
    $region45: #{adversary_forward.1} parent=5 // pred_check
      _
    $region46: #{adversary_forward.1} parent=5 // pred_check_branch
      %242 = sbr.rel (%p239) target = $region48
    $region47: #{adversary_forward.1} parent=5 // pred_region
      %s243 = ssub.s32 %s13, 1
      %s244 = smul.u32 16, %s18
      %p245 = scmp.lt.s32.totalorder %s244, 63
      %s246 = scalar_select %p245, %s244, 63
      %s247 = smul.addr %s246, 8
      %s248 = scalar_lea.vmem %s0, %s247
      %p249 = pneg %p39
      %p250 = pneg %p36
      %p251 = pneg %p60
      %p252 = pneg %p57
      %p253 = pneg %p81
      %p254 = pneg %p78
      %p255 = pneg %p102
      %p256 = pneg %p99
      %p257 = pneg %p123
      %p258 = pneg %p120
      %p259 = pneg %p144
      %p260 = pneg %p141
      %p261 = pneg %p165
      %p262 = pneg %p162
      %p263 = pneg %p191
      %p264 = pneg %p188
      %s265 = smul.u32 16, %s18
      %p266 = scmp.lt.s32.totalorder %s265, 63
      %s267 = scalar_select %p266, %s265, 63
      %s268 = smul.addr %s267, 8
      %s269 = scalar_lea.vmem %s7, %s268
      %s270 = smul.u32 16, %s18
      %p271 = scmp.lt.s32.totalorder %s270, 63
      %s272 = scalar_select %p271, %s270, 63
      %s273 = smul.addr %s272, 8
      %s274 = scalar_lea.vmem %s0, %s273
      %s275 = smul.u32 16, %s18
      %s276 = smul.u32 16, %s18
      %p277 = scmp.lt.s32.totalorder %s276, 63
      %s278 = scalar_select %p277, %s276, 63
      %s279 = smul.addr %s278, 8
      %s280 = scalar_lea.vmem %s7, %s279
      %s281 = smul.u32 16, %s18
      %v283 = vld [vmem:[%s274] sm:$0xff]
      %v284 = vld [vmem:[%s274 + $0x8] sm:$0xff]
      %v285 = vld [vmem:[%s274 + $0x10] sm:$0xff]
      %v286 = vld [vmem:[%s274 + $0x18] sm:$0xff]
      %v287 = vld [vmem:[%s274 + $0x20] sm:$0xff]
      %v288 = vld [vmem:[%s274 + $0x28] sm:$0xff]
      %v289 = vld [vmem:[%s274 + $0x30] sm:$0xff]
      %v290 = vld [vmem:[%s274 + $0x38] sm:$0xff]
      %v291 = vld [vmem:[%s274 + $0x40] sm:$0xff]
      %v292 = vld [vmem:[%s274 + $0x48] sm:$0xff]
      %v293 = vld [vmem:[%s274 + $0x50] sm:$0xff]
      %v294 = vld [vmem:[%s274 + $0x58] sm:$0xff]
      %v295 = vld [vmem:[%s274 + $0x60] sm:$0xff]
      %v296 = vld [vmem:[%s274 + $0x68] sm:$0xff]
      %v297 = vld [vmem:[%s274 + $0x70] sm:$0xff]
      %v298 = vld [vmem:[%s274 + $0x78] sm:$0xff]
      %v299 = vpack.c.bf16 %v284, %v283
      %v300 = vpack.c.bf16 %v286, %v285
      %v301 = vpack.c.bf16 %v288, %v287
      %v302 = vpack.c.bf16 %v290, %v289
      %v303 = vpack.c.bf16 %v292, %v291
      %v304 = vpack.c.bf16 %v294, %v293
      %v305 = vpack.c.bf16 %v296, %v295
      %v306 = vpack.c.bf16 %v298, %v297
      %v307 = vld [vmem:[%s1] sm:$0xf]
      %v308 = vld [vmem:[%s1 + $0x4] sm:$0xf]
      %v309 = vld [vmem:[%s1 + $0x8] sm:$0xf]
      %v310 = vld [vmem:[%s1 + $0xc] sm:$0xf]
      %v311 = vld [vmem:[%s2] sm:$0x1]
      %v313 = vperm.slane %v311, 0
      %v319 = vunpack.c.l.b16 %v307
      %v320 = vunpack.c.l.b16 %v308
      %v321 = vunpack.c.l.b16 %v309
      %v322 = vunpack.c.l.b16 %v310
      %v323 = vpack.c.b16 %v320, %v319
      %v324 = vpack.c.b16 %v322, %v321
      %vm327 = vcmask 261120
      %v329 = vsel %vm327, %v299, 0
      %v332 = vsel %vm327, %v300, 0
      %v335 = vsel %vm327, %v301, 0
      %v338 = vsel %vm327, %v302, 0
      %v341 = vsel %vm327, %v303, 0
      %v344 = vsel %vm327, %v304, 0
      %v347 = vsel %vm327, %v305, 0
      %v350 = vsel %vm327, %v306, 0
      %352 = vmatpush.bf16.msra.mxu0 0
      %353 = vmatpush.bf16.msra.mxu0 0
      %354 = vmatpush.bf16.msra.mxu0 0
      %355 = vmatpush.bf16.msra.mxu0 0
      %356 = vmatpush.bf16.msra.mxu0 0
      %357 = vmatpush.bf16.msra.mxu0 0
      %358 = vmatpush.bf16.msra.mxu0 %v324
      %359 = vmatpush.bf16.msra.mxu0 %v323
      %360 = vmatmul.bf16.gmra.mxu0 %v329
      %v361 = vpop.f32.mrf.mxu0
      %v362 = vadd.f32 %v313, %v361
      %v363 = vpop.f32.mrf.mxu0
      %v364 = vadd.f32 %v313, %v363
      %365 = vmatmul.bf16.gmra.mxu0 %v332
      %v366 = vpop.f32.mrf.mxu0
      %v367 = vadd.f32 %v313, %v366
      %v368 = vpop.f32.mrf.mxu0
      %v369 = vadd.f32 %v313, %v368
      %370 = vmatmul.bf16.gmra.mxu0 %v335
      %v371 = vpop.f32.mrf.mxu0
      %v372 = vadd.f32 %v313, %v371
      %v373 = vpop.f32.mrf.mxu0
      %v374 = vadd.f32 %v313, %v373
      %375 = vmatmul.bf16.gmra.mxu0 %v338
      %v376 = vpop.f32.mrf.mxu0
      %v377 = vadd.f32 %v313, %v376
      %v378 = vpop.f32.mrf.mxu0
      %v379 = vadd.f32 %v313, %v378
      %380 = vmatmul.bf16.gmra.mxu0 %v341
      %v381 = vpop.f32.mrf.mxu0
      %v382 = vadd.f32 %v313, %v381
      %v383 = vpop.f32.mrf.mxu0
      %v384 = vadd.f32 %v313, %v383
      %385 = vmatmul.bf16.gmra.mxu0 %v344
      %v386 = vpop.f32.mrf.mxu0
      %v387 = vadd.f32 %v313, %v386
      %v388 = vpop.f32.mrf.mxu0
      %v389 = vadd.f32 %v313, %v388
      %390 = vmatmul.bf16.gmra.mxu0 %v347
      %v391 = vpop.f32.mrf.mxu0
      %v392 = vadd.f32 %v313, %v391
      %v393 = vpop.f32.mrf.mxu0
      %v394 = vadd.f32 %v313, %v393
      %395 = vmatmul.bf16.gmra.mxu0 %v350
      %v396 = vpop.f32.mrf.mxu0
      %v397 = vadd.f32 %v313, %v396
      %v398 = vpop.f32.mrf.mxu0
      %v399 = vadd.f32 %v313, %v398
      %400 = vdwg.mxu0
      %v401 = vmax.f32 %v362, 0.0
      %v402 = vmax.f32 %v364, 0.0
      %v403 = vmax.f32 %v367, 0.0
      %v404 = vmax.f32 %v369, 0.0
      %v405 = vmax.f32 %v372, 0.0
      %v406 = vmax.f32 %v374, 0.0
      %v407 = vmax.f32 %v377, 0.0
      %v408 = vmax.f32 %v379, 0.0
      %v409 = vmax.f32 %v382, 0.0
      %v410 = vmax.f32 %v384, 0.0
      %v411 = vmax.f32 %v387, 0.0
      %v412 = vmax.f32 %v389, 0.0
      %v413 = vmax.f32 %v392, 0.0
      %v414 = vmax.f32 %v394, 0.0
      %v415 = vmax.f32 %v397, 0.0
      %v416 = vmax.f32 %v399, 0.0
      %v417 = vpack.c.bf16 %v402, %v401
      %v418 = vpack.c.bf16 %v404, %v403
      %v419 = vpack.c.bf16 %v406, %v405
      %v420 = vpack.c.bf16 %v408, %v407
      %v421 = vpack.c.bf16 %v410, %v409
      %v422 = vpack.c.bf16 %v412, %v411
      %v423 = vpack.c.bf16 %v414, %v413
      %v424 = vpack.c.bf16 %v416, %v415
      %v425 = vld [vmem:[%s3] sm:$0xf]
      %v426 = vld [vmem:[%s3 + $0x4] sm:$0xf]
      %v427 = vld [vmem:[%s3 + $0x8] sm:$0xf]
      %v428 = vld [vmem:[%s3 + $0xc] sm:$0xf]
      %v429 = vld [vmem:[%s3 + $0x10] sm:$0xf]
      %v430 = vld [vmem:[%s3 + $0x14] sm:$0xf]
      %v431 = vld [vmem:[%s3 + $0x18] sm:$0xf]
      %v432 = vld [vmem:[%s3 + $0x1c] sm:$0xf]
      %v433 = vld [vmem:[%s3 + $0x20] sm:$0xf]
      %v434 = vld [vmem:[%s3 + $0x24] sm:$0xf]
      %v435 = vld [vmem:[%s3 + $0x28] sm:$0xf]
      %v436 = vld [vmem:[%s3 + $0x2c] sm:$0xf]
      %v437 = vld [vmem:[%s3 + $0x30] sm:$0xf]
      %v438 = vld [vmem:[%s3 + $0x34] sm:$0xf]
      %v439 = vld [vmem:[%s3 + $0x38] sm:$0xf]
      %v440 = vld [vmem:[%s3 + $0x3c] sm:$0xf]
      %v441 = vld [vmem:[%s4] sm:$0x1]
      %v443 = vperm.slane %v441, 0
      %v461 = vunpack.c.l.b16 %v425
      %v462 = vunpack.c.l.b16 %v426
      %v463 = vunpack.c.l.b16 %v427
      %v464 = vunpack.c.l.b16 %v428
      %v465 = vunpack.c.l.b16 %v429
      %v466 = vunpack.c.l.b16 %v430
      %v467 = vunpack.c.l.b16 %v431
      %v468 = vunpack.c.l.b16 %v432
      %v469 = vunpack.c.l.b16 %v433
      %v470 = vunpack.c.l.b16 %v434
      %v471 = vunpack.c.l.b16 %v435
      %v472 = vunpack.c.l.b16 %v436
      %v473 = vunpack.c.l.b16 %v437
      %v474 = vunpack.c.l.b16 %v438
      %v475 = vunpack.c.l.b16 %v439
      %v476 = vunpack.c.l.b16 %v440
      %v477 = vpack.c.b16 %v462, %v461
      %v478 = vpack.c.b16 %v464, %v463
      %v479 = vpack.c.b16 %v466, %v465
      %v480 = vpack.c.b16 %v468, %v467
      %v481 = vpack.c.b16 %v470, %v469
      %v482 = vpack.c.b16 %v472, %v471
      %v483 = vpack.c.b16 %v474, %v473
      %v484 = vpack.c.b16 %v476, %v475
      %493 = vmatpush.bf16.msra.mxu0 %v484
      %494 = vmatpush.bf16.msra.mxu0 %v483
      %495 = vmatpush.bf16.msra.mxu0 %v482
      %496 = vmatpush.bf16.msra.mxu0 %v481
      %497 = vmatpush.bf16.msra.mxu0 %v480
      %498 = vmatpush.bf16.msra.mxu0 %v479
      %499 = vmatpush.bf16.msra.mxu0 %v478
      %500 = vmatpush.bf16.msra.mxu0 %v477
      %501 = vmatmul.bf16.gmra.mxu0 %v417
      %v502 = vpop.f32.mrf.mxu0
      %v503 = vadd.f32 %v443, %v502
      %v504 = vpop.f32.mrf.mxu0
      %v505 = vadd.f32 %v443, %v504
      %506 = vmatmul.bf16.gmra.mxu0 %v418
      %v507 = vpop.f32.mrf.mxu0
      %v508 = vadd.f32 %v443, %v507
      %v509 = vpop.f32.mrf.mxu0
      %v510 = vadd.f32 %v443, %v509
      %511 = vmatmul.bf16.gmra.mxu0 %v419
      %v512 = vpop.f32.mrf.mxu0
      %v513 = vadd.f32 %v443, %v512
      %v514 = vpop.f32.mrf.mxu0
      %v515 = vadd.f32 %v443, %v514
      %516 = vmatmul.bf16.gmra.mxu0 %v420
      %v517 = vpop.f32.mrf.mxu0
      %v518 = vadd.f32 %v443, %v517
      %v519 = vpop.f32.mrf.mxu0
      %v520 = vadd.f32 %v443, %v519
      %521 = vmatmul.bf16.gmra.mxu0 %v421
      %v522 = vpop.f32.mrf.mxu0
      %v523 = vadd.f32 %v443, %v522
      %v524 = vpop.f32.mrf.mxu0
      %v525 = vadd.f32 %v443, %v524
      %526 = vmatmul.bf16.gmra.mxu0 %v422
      %v527 = vpop.f32.mrf.mxu0
      %v528 = vadd.f32 %v443, %v527
      %v529 = vpop.f32.mrf.mxu0
      %v530 = vadd.f32 %v443, %v529
      %531 = vmatmul.bf16.gmra.mxu0 %v423
      %v532 = vpop.f32.mrf.mxu0
      %v533 = vadd.f32 %v443, %v532
      %v534 = vpop.f32.mrf.mxu0
      %v535 = vadd.f32 %v443, %v534
      %536 = vmatmul.bf16.gmra.mxu0 %v424
      %v537 = vpop.f32.mrf.mxu0
      %v538 = vadd.f32 %v443, %v537
      %v539 = vpop.f32.mrf.mxu0
      %v540 = vadd.f32 %v443, %v539
      %541 = vdwg.mxu0
      %v542 = vmax.f32 %v503, 0.0
      %v543 = vmax.f32 %v505, 0.0
      %v544 = vmax.f32 %v508, 0.0
      %v545 = vmax.f32 %v510, 0.0
      %v546 = vmax.f32 %v513, 0.0
      %v547 = vmax.f32 %v515, 0.0
      %v548 = vmax.f32 %v518, 0.0
      %v549 = vmax.f32 %v520, 0.0
      %v550 = vmax.f32 %v523, 0.0
      %v551 = vmax.f32 %v525, 0.0
      %v552 = vmax.f32 %v528, 0.0
      %v553 = vmax.f32 %v530, 0.0
      %v554 = vmax.f32 %v533, 0.0
      %v555 = vmax.f32 %v535, 0.0
      %v556 = vmax.f32 %v538, 0.0
      %v557 = vmax.f32 %v540, 0.0
      %v558 = vpack.c.bf16 %v543, %v542
      %v559 = vpack.c.bf16 %v545, %v544
      %v560 = vpack.c.bf16 %v547, %v546
      %v561 = vpack.c.bf16 %v549, %v548
      %v562 = vpack.c.bf16 %v551, %v550
      %v563 = vpack.c.bf16 %v553, %v552
      %v564 = vpack.c.bf16 %v555, %v554
      %v565 = vpack.c.bf16 %v557, %v556
      %v566 = vld [vmem:[%s5] sm:$0xf]
      %v567 = vld [vmem:[%s5 + $0x4] sm:$0xf]
      %v568 = vld [vmem:[%s5 + $0x8] sm:$0xf]
      %v569 = vld [vmem:[%s5 + $0xc] sm:$0xf]
      %v570 = vld [vmem:[%s5 + $0x10] sm:$0xf]
      %v571 = vld [vmem:[%s5 + $0x14] sm:$0xf]
      %v572 = vld [vmem:[%s5 + $0x18] sm:$0xf]
      %v573 = vld [vmem:[%s5 + $0x1c] sm:$0xf]
      %v574 = vld [vmem:[%s5 + $0x20] sm:$0xf]
      %v575 = vld [vmem:[%s5 + $0x24] sm:$0xf]
      %v576 = vld [vmem:[%s5 + $0x28] sm:$0xf]
      %v577 = vld [vmem:[%s5 + $0x2c] sm:$0xf]
      %v578 = vld [vmem:[%s5 + $0x30] sm:$0xf]
      %v579 = vld [vmem:[%s5 + $0x34] sm:$0xf]
      %v580 = vld [vmem:[%s5 + $0x38] sm:$0xf]
      %v581 = vld [vmem:[%s5 + $0x3c] sm:$0xf]
      %v582 = vld [vmem:[%s6] sm:$0x1]
      %v584 = vperm.slane %v582, 0
      %v602 = vunpack.c.l.b16 %v566
      %v603 = vunpack.c.l.b16 %v567
      %v604 = vunpack.c.l.b16 %v568
      %v605 = vunpack.c.l.b16 %v569
      %v606 = vunpack.c.l.b16 %v570
      %v607 = vunpack.c.l.b16 %v571
      %v608 = vunpack.c.l.b16 %v572
      %v609 = vunpack.c.l.b16 %v573
      %v610 = vunpack.c.l.b16 %v574
      %v611 = vunpack.c.l.b16 %v575
      %v612 = vunpack.c.l.b16 %v576
      %v613 = vunpack.c.l.b16 %v577
      %v614 = vunpack.c.l.b16 %v578
      %v615 = vunpack.c.l.b16 %v579
      %v616 = vunpack.c.l.b16 %v580
      %v617 = vunpack.c.l.b16 %v581
      %v618 = vpack.c.b16 %v603, %v602
      %v619 = vpack.c.b16 %v605, %v604
      %v620 = vpack.c.b16 %v607, %v606
      %v621 = vpack.c.b16 %v609, %v608
      %v622 = vpack.c.b16 %v611, %v610
      %v623 = vpack.c.b16 %v613, %v612
      %v624 = vpack.c.b16 %v615, %v614
      %v625 = vpack.c.b16 %v617, %v616
      %634 = vmatpush.bf16.msra.mxu0 %v625
      %635 = vmatpush.bf16.msra.mxu0 %v624
      %636 = vmatpush.bf16.msra.mxu0 %v623
      %637 = vmatpush.bf16.msra.mxu0 %v622
      %638 = vmatpush.bf16.msra.mxu0 %v621
      %639 = vmatpush.bf16.msra.mxu0 %v620
      %640 = vmatpush.bf16.msra.mxu0 %v619
      %641 = vmatpush.bf16.msra.mxu0 %v618
      %642 = vmatmul.bf16.gmra.mxu0 %v558
      %v643 = vpop.f32.mrf.mxu0
      %v644 = vadd.f32 %v584, %v643
      %v645 = vpop.f32.mrf.mxu0
      %v646 = vadd.f32 %v584, %v645
      %647 = vmatmul.bf16.gmra.mxu0 %v559
      %v648 = vpop.f32.mrf.mxu0
      %v649 = vadd.f32 %v584, %v648
      %v650 = vpop.f32.mrf.mxu0
      %v651 = vadd.f32 %v584, %v650
      %652 = vmatmul.bf16.gmra.mxu0 %v560
      %v653 = vpop.f32.mrf.mxu0
      %v654 = vadd.f32 %v584, %v653
      %v655 = vpop.f32.mrf.mxu0
      %v656 = vadd.f32 %v584, %v655
      %657 = vmatmul.bf16.gmra.mxu0 %v561
      %v658 = vpop.f32.mrf.mxu0
      %v659 = vadd.f32 %v584, %v658
      %v660 = vpop.f32.mrf.mxu0
      %v661 = vadd.f32 %v584, %v660
      %662 = vmatmul.bf16.gmra.mxu0 %v562
      %v663 = vpop.f32.mrf.mxu0
      %v664 = vadd.f32 %v584, %v663
      %v665 = vpop.f32.mrf.mxu0
      %v666 = vadd.f32 %v584, %v665
      %667 = vmatmul.bf16.gmra.mxu0 %v563
      %v668 = vpop.f32.mrf.mxu0
      %v669 = vadd.f32 %v584, %v668
      %v670 = vpop.f32.mrf.mxu0
      %v671 = vadd.f32 %v584, %v670
      %672 = vmatmul.bf16.gmra.mxu0 %v564
      %v673 = vpop.f32.mrf.mxu0
      %v674 = vadd.f32 %v584, %v673
      %v675 = vpop.f32.mrf.mxu0
      %v676 = vadd.f32 %v584, %v675
      %677 = vmatmul.bf16.gmra.mxu0 %v565
      %v678 = vpop.f32.mrf.mxu0
      %v679 = vadd.f32 %v584, %v678
      %v680 = vpop.f32.mrf.mxu0
      %v681 = vadd.f32 %v584, %v680
      %682 = vdwg.mxu0
      %683 = vst [vmem:[%s280] sm:$0xff] %v644
      %684 = vst [vmem:[%s280 + $0x8] sm:$0xff] %v646
      %685 = vst [vmem:[%s280 + $0x10] sm:$0xff] %v649
      %686 = vst [vmem:[%s280 + $0x18] sm:$0xff] %v651
      %687 = vst [vmem:[%s280 + $0x20] sm:$0xff] %v654
      %688 = vst [vmem:[%s280 + $0x28] sm:$0xff] %v656
      %689 = vst [vmem:[%s280 + $0x30] sm:$0xff] %v659
      %690 = vst [vmem:[%s280 + $0x38] sm:$0xff] %v661
      %691 = vst [vmem:[%s280 + $0x40] sm:$0xff] %v664
      %692 = vst [vmem:[%s280 + $0x48] sm:$0xff] %v666
      %693 = vst [vmem:[%s280 + $0x50] sm:$0xff] %v669
      %694 = vst [vmem:[%s280 + $0x58] sm:$0xff] %v671
      %695 = vst [vmem:[%s280 + $0x60] sm:$0xff] %v674
      %696 = vst [vmem:[%s280 + $0x68] sm:$0xff] %v676
      %697 = vst [vmem:[%s280 + $0x70] sm:$0xff] %v679
      %698 = vst [vmem:[%s280 + $0x78] sm:$0xff] %v681
      %s699 = smul.u32 16, %s18
      %p700 = scmp.lt.s32.totalorder %s699, 63
      %s701 = scalar_select %p700, %s699, 63
      %s702 = smul.addr %s701, 8
      %s703 = scalar_lea.vmem %s7, %s702
      // Predicated region
      $region49: #{adversary_forward.1} parent=47 // pred_check
        %p704 = pneg %p188
      $region50: #{adversary_forward.1} parent=47 // pred_check_branch
        %706 = sbr.rel (%p704) target = $region52
      $region51: #{adversary_forward.1} parent=47 // pred_region
        %s707 = smul.u32 16, %s18
      $region52: #{adversary_forward.1} parent=47 // pred_fallthru
        _
    $region48: #{adversary_forward.1} parent=5 // pred_fallthru
      _
    %p708 = scmp.le.s32.totalorder 2, %s13
    // Predicated region
    $region53: #{adversary_forward.1} parent=5 // pred_check
      %p709 = pneg %p708
    $region54: #{adversary_forward.1} parent=5 // pred_check_branch
      %711 = sbr.rel (%p709) target = $region56
    $region55: #{adversary_forward.1} parent=5 // pred_region
      %s712 = ssub.s32 %s13, 2
      // Predicated region
      $region57: #{adversary_forward.1} parent=55 // pred_check
        %p713 = pneg %p194
      $region58: #{adversary_forward.1} parent=55 // pred_check_branch
        %715 = sbr.rel (%p713) target = $region60
      $region59: #{adversary_forward.1} parent=55 // pred_region
        %s716 = smul.u32 16, %s19
        %p717 = scmp.lt.s32.totalorder %s716, 63
        %s718 = scalar_select %p717, %s716, 63
        %s719 = smul.addr %s718, 8
        %s720 = scalar_lea.vmem %s7, %s719
      $region60: #{adversary_forward.1} parent=55 // pred_fallthru
        _
    $region56: #{adversary_forward.1} parent=5 // pred_fallthru
      _
  $region6: #{adversary_forward.1} parent=0 // loop_footer
    %s17 = sadd.s32 1, %s13
  $region7: #{adversary_forward.1} parent=0 // loop_footer_branch
    %12 = sbr.rel target = $region3
  $region8: #{adversary_forward.1} parent=0 // loop_exit
    _

</llo_original>
